<compile_context>
chip_gen: v6e
topology: v6e:2x2x1
jax: 0.10.0
libtpu: 0.0.40
codegen_flags: <defaults>
</compile_context>

<pallas_src>
import functools

import jax
import jax.numpy as jnp
from jax.experimental import pallas as pl
from jax.experimental.pallas import tpu as pltpu


def _round_up(n: int, m: int) -> int:
    return ((n + m - 1) // m) * m


@functools.lru_cache(maxsize=None)
def _tpu_tuning():
    """Returns (default block_batch, vmem_limit_bytes, assume_two_tensorcores)."""
    try:
        vmem_cap = pltpu.get_tpu_info().vmem_capacity_bytes
    except Exception:
        return 1024, 64 * 1024 * 1024, False
    if vmem_cap <= 80 * 1024 * 1024:
        # v7x-class: 64 MiB VMEM per TC, 2 TCs, ~3.2 TB/s HBM -> bigger tiles, >=2 grid steps.
        return 2048, 48 * 1024 * 1024, True
    # v5e / v6e class: 128 MiB VMEM, single TensorCore.
    return 1024, 96 * 1024 * 1024, False


def _mlp_actor_kernel(x_ref, w1_ref, b1_ref, w2_ref, b2_ref, w3_ref, b3_ref, out_ref):
    """Fused 3-layer MLP forward on one batch tile.

    x arrives as f32 and is cast to the weight dtype (bf16) in-kernel; dots run on
    the MXU with f32 accumulation; bias add + tanh stay f32 (valid on all gens).
    """
    x = x_ref[...].astype(w1_ref.dtype)

    h = jnp.dot(x, w1_ref[...], preferred_element_type=jnp.float32)
    h = jnp.tanh(h + b1_ref[...])                                   # hidden_act = Tanh

    h = jnp.dot(h.astype(w2_ref.dtype), w2_ref[...],
                preferred_element_type=jnp.float32)
    h = jnp.tanh(h + b2_ref[...])                                   # hidden_act = Tanh

    logits = jnp.dot(h.astype(w3_ref.dtype), w3_ref[...],
                     preferred_element_type=jnp.float32)
    out_ref[...] = (logits + b3_ref[...]).astype(out_ref.dtype)     # out_act = Identity


def prepare_mlp_actor_params(params, *, compute_dtype=jnp.bfloat16):
    """One-time parameter prep (do NOT call per forward step):
    cast weights to the MXU compute dtype, keep biases f32 with shape (1, out)."""
    w1, b1, w2, b2, w3, b3 = params
    prep_w = lambda w: jnp.asarray(w, compute_dtype)
    prep_b = lambda b: jnp.asarray(b, jnp.float32).reshape(1, -1)
    return (prep_w(w1), prep_b(b1), prep_w(w2), prep_b(b2), prep_w(w3), prep_b(b3))


@functools.partial(jax.jit, static_argnames=("block_batch",))
def mlp_categorical_actor_forward(x, prepared_params, *, block_batch=None):
    """Pallas-fused forward pass producing Categorical logits.

    x: [batch, obs_dim] float32 (unpadded, streamed as-is)
    prepared_params: output of prepare_mlp_actor_params
    returns: [batch, action_dim] float32 logits
    """
    w1, b1, w2, b2, w3, b3 = prepared_params
    batch, obs_dim = x.shape
    h1, h2, act_dim = w1.shape[1], w2.shape[1], w3.shape[1]
    assert w1.shape[0] == obs_dim and w2.shape[0] == h1 and w3.shape[0] == h2

    default_bb, vmem_limit, two_tc = _tpu_tuning()
    bb = default_bb if block_batch is None else block_batch

    # Batch tiling: big blocks amortize the ~0.35 us/grid-step overhead. No explicit
    # batch padding: the last block may be partial (masked on write).
    batch8 = _round_up(batch, 8)
    tb = max(8, min(bb, batch8))
    # On 2-TensorCore chips make sure the "parallel" batch axis has >= 2 grid steps.
    if two_tc and batch8 >= 16 and pl.cdiv(batch, tb) < 2:
        tb = _round_up(pl.cdiv(batch8, 2), 8)

    # VMEM-fit guard for the resident-weights scheme (default pipeline double-buffers
    # everything, including the constant-index weight blocks).
    wbytes = 2 * sum(a.size * a.dtype.itemsize for a in (w1, w2, w3, b1, b2, b3))

    def vmem_estimate(t):
        io = 2 * t * (obs_dim + act_dim) * 4           # double-buffered x / out blocks (f32)
        interm = 3 * t * max(h1, h2, act_dim) * 4      # f32 intermediates, headroom
        return wbytes + io + interm

    while tb > 8 and vmem_estimate(tb) > int(0.8 * vmem_limit):
        tb = max(8, _round_up(tb // 2, 8))
    if vmem_estimate(tb) > vmem_limit:
        raise ValueError(
            "MLP weights too large to stay VMEM-resident; add a K-reduction grid axis "
            f"(estimated {vmem_estimate(tb)} B > vmem limit {vmem_limit} B).")

    grid = (pl.cdiv(batch, tb),)
    const_map = lambda i: (0, 0)   # weights/biases: same block every step -> resident

    cost = pl.CostEstimate(
        flops=2 * batch * (obs_dim * h1 + h1 * h2 + h2 * act_dim),
        transcendentals=batch * (h1 + h2),
        bytes_accessed=(x.size * x.dtype.itemsize + batch * act_dim * 4
                        + sum(a.size * a.dtype.itemsize
                              for a in (w1, w2, w3, b1, b2, b3))),
    )

    return pl.pallas_call(
        _mlp_actor_kernel,
        out_shape=jax.ShapeDtypeStruct((batch, act_dim), jnp.float32),
        grid=grid,
        in_specs=[
            pl.BlockSpec((tb, obs_dim), lambda i: (i, 0)),   # x: streamed per step (f32)
            pl.BlockSpec((obs_dim, h1), const_map),          # weights/biases: resident
            pl.BlockSpec((1, h1), const_map),
            pl.BlockSpec((h1, h2), const_map),
            pl.BlockSpec((1, h2), const_map),
            pl.BlockSpec((h2, act_dim), const_map),
            pl.BlockSpec((1, act_dim), const_map),
        ],
        out_specs=pl.BlockSpec((tb, act_dim), lambda i: (i, 0)),
        compiler_params=pltpu.CompilerParams(
            dimension_semantics=("parallel",),               # megacore sharding on 2-TC chips
            vmem_limit_bytes=vmem_limit,                     # generation-gated
        ),
        cost_estimate=cost,
    )(x, w1, b1, w2, b2, w3, b3)


def init_mlp_params(key, obs_dim, hidden_sizes, action_dim):
    """Deterministic init mimicking PyTorch nn.Linear default:
    U(-1/sqrt(fan_in), 1/sqrt(fan_in)) for both weight and bias."""
    sizes = [obs_dim] + list(hidden_sizes) + [action_dim]
    params = []
    for i in range(len(sizes) - 1):
        fan_in, fan_out = sizes[i], sizes[i + 1]
        key, kw, kb = jax.random.split(key, 3)
        bound = 1.0 / jnp.sqrt(jnp.float32(fan_in))
        w = jax.random.uniform(kw, (fan_in, fan_out), jnp.float32, -bound, bound)
        b = jax.random.uniform(kb, (1, fan_out), jnp.float32, -bound, bound)
        params.extend([w, b])
    return tuple(params)


def _reference_forward(x, params, compute_dtype=jnp.float32):
    """Pure-JAX reference with the same mixed-precision policy as the kernel."""
    w1, b1, w2, b2, w3, b3 = params
    cd = compute_dtype
    h = jnp.tanh(jnp.dot(x.astype(cd), w1.astype(cd),
                         preferred_element_type=jnp.float32) + b1)
    h = jnp.tanh(jnp.dot(h.astype(cd), w2.astype(cd),
                         preferred_element_type=jnp.float32) + b2)
    return jnp.dot(h.astype(cd), w3.astype(cd),
                   preferred_element_type=jnp.float32) + b3


if __name__ == "__main__":
    key = jax.random.PRNGKey(0)

    # Small shapes consistent with the module's constructor:
    # MlpCategoricalActor(obs_dim=16, hidden_sizes=(32, 32), action_dim=8,
    #                     hidden_act=nn.Tanh, out_act=nn.Identity)
    batch, obs_dim, hidden_sizes, action_dim = 8, 16, (32, 32), 8

    key, kx = jax.random.split(key)
    x = jax.random.normal(kx, (batch, obs_dim), jnp.float32)
    params = init_mlp_params(key, obs_dim, hidden_sizes, action_dim)
    prepared = prepare_mlp_actor_params(params)          # one-time cast, reused every call

    logits = mlp_categorical_actor_forward(x, prepared)
    logits = jax.block_until_ready(logits)
    assert logits.shape == (batch, action_dim)
    assert bool(jnp.isfinite(logits).all())

    # Tight check vs. a reference using the identical bf16-operand / f32-accum policy.
    ref_mixed = _reference_forward(x, params, compute_dtype=jnp.bfloat16)
    assert jnp.allclose(logits, ref_mixed, atol=2e-3, rtol=2e-3), "mismatch vs mixed-precision reference"

    # Looser sanity check vs. the pure-f32 PyTorch-equivalent forward.
    ref_f32 = _reference_forward(x, params, compute_dtype=jnp.float32)
    assert jnp.allclose(logits, ref_f32, atol=5e-2, rtol=5e-2), "mismatch vs f32 reference"

    # TODO(synk): .act()/.log_prob() (Categorical sampling / log-prob) are host-side
    # jax.random / log-softmax ops on the returned logits; the module's forward()
    # itself only produces logits, which is what this kernel computes.
    print("KERNEL_OK")
</pallas_src>

<mosaic_0001>
module attributes {stable_mosaic.version = 11 : i64} {
  func.func @_mlp_actor_kernel(%arg0: i32, %arg1: memref<8x16xf32, #tpu.memory_space<vmem>>, %arg2: memref<16x32xbf16, #tpu.memory_space<vmem>>, %arg3: memref<1x32xf32, #tpu.memory_space<vmem>>, %arg4: memref<32x32xbf16, #tpu.memory_space<vmem>>, %arg5: memref<1x32xf32, #tpu.memory_space<vmem>>, %arg6: memref<32x8xbf16, #tpu.memory_space<vmem>>, %arg7: memref<1x8xf32, #tpu.memory_space<vmem>>, %arg8: memref<8x8xf32, #tpu.memory_space<vmem>>) attributes {dimension_semantics = [#tpu.dimension_semantics<parallel>], iteration_bounds = array<i64: 1>, scalar_prefetch = 0 : i64, scratch_operands = 0 : i64, tpu.core_type = #tpu.core_type<tc>, window_params = [{transform_indices = @transform_0, window_bounds = array<i64: 8, 16>}, {pipeline_mode = #tpu.pipeline_mode<synchronous>, transform_indices = @transform_1, window_bounds = array<i64: 16, 32>}, {pipeline_mode = #tpu.pipeline_mode<synchronous>, transform_indices = @transform_2, window_bounds = array<i64: 1, 32>}, {pipeline_mode = #tpu.pipeline_mode<synchronous>, transform_indices = @transform_3, window_bounds = array<i64: 32, 32>}, {pipeline_mode = #tpu.pipeline_mode<synchronous>, transform_indices = @transform_4, window_bounds = array<i64: 1, 32>}, {pipeline_mode = #tpu.pipeline_mode<synchronous>, transform_indices = @transform_5, window_bounds = array<i64: 32, 8>}, {pipeline_mode = #tpu.pipeline_mode<synchronous>, transform_indices = @transform_6, window_bounds = array<i64: 1, 8>}, {transform_indices = @transform_7, window_bounds = array<i64: 8, 8>}]} {
    %c0 = arith.constant 0 : index
    %c0_0 = arith.constant 0 : index
    %0 = vector.load %arg1[%c0, %c0_0] : memref<8x16xf32, #tpu.memory_space<vmem>>, vector<8x16xf32>
    %1 = arith.truncf %0 : vector<8x16xf32> to vector<8x16xbf16>
    %c0_1 = arith.constant 0 : index
    %c0_2 = arith.constant 0 : index
    %2 = vector.load %arg2[%c0_1, %c0_2] : memref<16x32xbf16, #tpu.memory_space<vmem>>, vector<16x32xbf16>
    %cst = arith.constant dense<0.000000e+00> : vector<8x32xf32>
    %3 = tpu.matmul %1, %2, %cst {dimension_numbers = #tpu.dot_dimension_numbers<[1], [0], [0], [1], [0, 0, 1, 1], [], []>} : vector<8x16xbf16>, vector<16x32xbf16>, vector<8x32xf32> -> vector<8x32xf32>
    %c0_3 = arith.constant 0 : index
    %c0_4 = arith.constant 0 : index
    %4 = vector.load %arg3[%c0_3, %c0_4] : memref<1x32xf32, #tpu.memory_space<vmem>>, vector<1x32xf32>
    %5 = vector.broadcast %4 : vector<1x32xf32> to vector<8x32xf32>
    %6 = arith.addf %3, %5 : vector<8x32xf32>
    %7 = math.tanh %6 : vector<8x32xf32>
    %8 = arith.truncf %7 : vector<8x32xf32> to vector<8x32xbf16>
    %c0_5 = arith.constant 0 : index
    %c0_6 = arith.constant 0 : index
    %9 = vector.load %arg4[%c0_5, %c0_6] : memref<32x32xbf16, #tpu.memory_space<vmem>>, vector<32x32xbf16>
    %cst_7 = arith.constant dense<0.000000e+00> : vector<8x32xf32>
    %10 = tpu.matmul %8, %9, %cst_7 {dimension_numbers = #tpu.dot_dimension_numbers<[1], [0], [0], [1], [0, 0, 1, 1], [], []>} : vector<8x32xbf16>, vector<32x32xbf16>, vector<8x32xf32> -> vector<8x32xf32>
    %c0_8 = arith.constant 0 : index
    %c0_9 = arith.constant 0 : index
    %11 = vector.load %arg5[%c0_8, %c0_9] : memref<1x32xf32, #tpu.memory_space<vmem>>, vector<1x32xf32>
    %12 = vector.broadcast %11 : vector<1x32xf32> to vector<8x32xf32>
    %13 = arith.addf %10, %12 : vector<8x32xf32>
    %14 = math.tanh %13 : vector<8x32xf32>
    %15 = arith.truncf %14 : vector<8x32xf32> to vector<8x32xbf16>
    %c0_10 = arith.constant 0 : index
    %c0_11 = arith.constant 0 : index
    %16 = vector.load %arg6[%c0_10, %c0_11] : memref<32x8xbf16, #tpu.memory_space<vmem>>, vector<32x8xbf16>
    %cst_12 = arith.constant dense<0.000000e+00> : vector<8x8xf32>
    %17 = tpu.matmul %15, %16, %cst_12 {dimension_numbers = #tpu.dot_dimension_numbers<[1], [0], [0], [1], [0, 0, 1, 1], [], []>} : vector<8x32xbf16>, vector<32x8xbf16>, vector<8x8xf32> -> vector<8x8xf32>
    %c0_13 = arith.constant 0 : index
    %c0_14 = arith.constant 0 : index
    %18 = vector.load %arg7[%c0_13, %c0_14] : memref<1x8xf32, #tpu.memory_space<vmem>>, vector<1x8xf32>
    %19 = vector.broadcast %18 : vector<1x8xf32> to vector<8x8xf32>
    %20 = arith.addf %17, %19 : vector<8x8xf32>
    %c0_15 = arith.constant 0 : index
    %c0_16 = arith.constant 0 : index
    %21 = vector.load %arg8[%c0_15, %c0_16] : memref<8x8xf32, #tpu.memory_space<vmem>>, vector<8x8xf32>
    tpu.vector_store %arg8[%c0_15, %c0_16], %20 {strides = array<i32>} : memref<8x8xf32, #tpu.memory_space<vmem>>, vector<8x8xf32>,
    return
  }
  func.func @transform_0(%arg0: i32) -> (i32, i32) {
    %c0_i32 = arith.constant 0 : i32
    %c0_i32_0 = arith.constant 0 : i32
    return %arg0, %c0_i32 : i32, i32
  }
  func.func @transform_1(%arg0: i32) -> (i32, i32) {
    %c0_i32 = arith.constant 0 : i32
    %c0_i32_0 = arith.constant 0 : i32
    %c0_i32_1 = arith.constant 0 : i32
    return %c0_i32, %c0_i32_0 : i32, i32
  }
  func.func @transform_2(%arg0: i32) -> (i32, i32) {
    %c0_i32 = arith.constant 0 : i32
    %c0_i32_0 = arith.constant 0 : i32
    %c0_i32_1 = arith.constant 0 : i32
    return %c0_i32, %c0_i32_0 : i32, i32
  }
  func.func @transform_3(%arg0: i32) -> (i32, i32) {
    %c0_i32 = arith.constant 0 : i32
    %c0_i32_0 = arith.constant 0 : i32
    %c0_i32_1 = arith.constant 0 : i32
    return %c0_i32, %c0_i32_0 : i32, i32
  }
  func.func @transform_4(%arg0: i32) -> (i32, i32) {
    %c0_i32 = arith.constant 0 : i32
    %c0_i32_0 = arith.constant 0 : i32
    %c0_i32_1 = arith.constant 0 : i32
    return %c0_i32, %c0_i32_0 : i32, i32
  }
  func.func @transform_5(%arg0: i32) -> (i32, i32) {
    %c0_i32 = arith.constant 0 : i32
    %c0_i32_0 = arith.constant 0 : i32
    %c0_i32_1 = arith.constant 0 : i32
    return %c0_i32, %c0_i32_0 : i32, i32
  }
  func.func @transform_6(%arg0: i32) -> (i32, i32) {
    %c0_i32 = arith.constant 0 : i32
    %c0_i32_0 = arith.constant 0 : i32
    %c0_i32_1 = arith.constant 0 : i32
    return %c0_i32, %c0_i32_0 : i32, i32
  }
  func.func @transform_7(%arg0: i32) -> (i32, i32) {
    %c0_i32 = arith.constant 0 : i32
    %c0_i32_0 = arith.constant 0 : i32
    return %arg0, %c0_i32 : i32, i32
  }
}

</mosaic_0001>

<llo_original>
// kernel: mlp_categorical_actor_forward.1
$region0: #{mlp_categorical_actor_forward.1}
  #allocation0 [shape = 'u32[]', space=smem, size = 0x4, offset = 0x4, fixed_abs, tag = 'smem constant byte address 0x4 - core index']
  #allocation1 [shape = 'u32[144,128]{1,0:T(1,128)}', space=vmem, size = 0x12000, scoped, tag = 'internal scratch']
  %s0 = inlined_call_operand.vmem [shape: f32[8,16], index: 0, kind: input, shape index: {}]
  %s1 = inlined_call_operand.hbm [shape: bf16[16,32], index: 1, kind: input, shape index: {}]
  %s2 = inlined_call_operand.vmem [shape: f32[1,32], index: 2, kind: input, shape index: {}]
  %s3 = inlined_call_operand.vmem [shape: bf16[32,32], index: 3, kind: input, shape index: {}]
  %s4 = inlined_call_operand.hbm [shape: f32[1,32], index: 4, kind: input, shape index: {}]
  %s5 = inlined_call_operand.vmem [shape: bf16[32,8], index: 5, kind: input, shape index: {}]
  %s6 = inlined_call_operand.vmem [shape: f32[1,8], index: 6, kind: input, shape index: {}]
  %s7 = inlined_call_operand.hbm [shape: f32[8,8], index: 7, kind: output, shape index: {}]
  %s8 = sld [smem:[#allocation0]]
  $region46: #{mlp_categorical_actor_forward.1} parent=0
    _
  %s10 = ssub.s32 1, %s8
  %s11 = scalar_select 0, %s10, %s8
  $region1: #{mlp_categorical_actor_forward.1} parent=0
    #allocation2 [shape = 'u8[4096]{0}', space=vmem, size = 0x1000, scoped, tag = 'input window, operand 1, single buffered']
    #allocation3 [shape = 's32[1]{0}', space=sflag, size = 0x4, scoped, tag = 'scoped memory for mlp_categorical_actor_forward.1']
    #allocation4 [shape = 's32[1]{0}', space=sflag, size = 0x4, scoped, tag = 'scoped memory for mlp_categorical_actor_forward.1']
    #allocation5 [shape = 'u8[512]{0}', space=vmem, size = 0x400, scoped, tag = 'input window, operand 4, single buffered']
    #allocation6 [shape = 's32[1]{0}', space=sflag, size = 0x4, scoped, tag = 'scoped memory for mlp_categorical_actor_forward.1']
    #allocation7 [shape = 'u8[4096]{0}', space=vmem, size = 0x1000, scoped, tag = 'output window, operand 0, single buffered']
    %12 = vsyncpa [#allocation3], 0
    %13 = vsyncpa [#allocation6], 0
    %14 = vsyncpa [#allocation4], 0
    // Predicated region
    $region2: #{mlp_categorical_actor_forward.1} parent=1 // pred_check
      _
    $region3: #{mlp_categorical_actor_forward.1} parent=1 // pred_check_branch
      %16 = sbr.rel (0) target = $region5
    $region4: #{mlp_categorical_actor_forward.1} parent=1 // pred_region
      _
    $region5: #{mlp_categorical_actor_forward.1} parent=1 // pred_fallthru
      _
    // Predicated region
    $region6: #{mlp_categorical_actor_forward.1} parent=1 // pred_check
      _
    $region7: #{mlp_categorical_actor_forward.1} parent=1 // pred_check_branch
      %18 = sbr.rel (0) target = $region9
    $region8: #{mlp_categorical_actor_forward.1} parent=1 // pred_region
      %s20 = ssub.s32 128, 128
      %21 = vsyncadd [#allocation3], %s20
      %s22 = sshll.u32 [#allocation2], 4
      %s23 = int_to_ptr.vmem [resolvable:$true] %s22
      %28 = dma.hbm_to_vmem [thread:$0]  %s1, 128, %s23, [#allocation3], 64, 64, 4
    $region9: #{mlp_categorical_actor_forward.1} parent=1 // pred_fallthru
      _
    // Predicated region
    $region10: #{mlp_categorical_actor_forward.1} parent=1 // pred_check
      _
    $region11: #{mlp_categorical_actor_forward.1} parent=1 // pred_check_branch
      %30 = sbr.rel (0) target = $region13
    $region12: #{mlp_categorical_actor_forward.1} parent=1 // pred_region
      _
    $region13: #{mlp_categorical_actor_forward.1} parent=1 // pred_fallthru
      _
    // Predicated region
    $region14: #{mlp_categorical_actor_forward.1} parent=1 // pred_check
      _
    $region15: #{mlp_categorical_actor_forward.1} parent=1 // pred_check_branch
      %32 = sbr.rel (0) target = $region17
    $region16: #{mlp_categorical_actor_forward.1} parent=1 // pred_region
      _
    $region17: #{mlp_categorical_actor_forward.1} parent=1 // pred_fallthru
      _
    // Predicated region
    $region18: #{mlp_categorical_actor_forward.1} parent=1 // pred_check
      _
    $region19: #{mlp_categorical_actor_forward.1} parent=1 // pred_check_branch
      %34 = sbr.rel (0) target = $region21
    $region20: #{mlp_categorical_actor_forward.1} parent=1 // pred_region
      %s36 = ssub.s32 16, 16
      %37 = vsyncadd [#allocation6], %s36
      %s39 = sshll.u32 [#allocation5], 4
      %s40 = int_to_ptr.vmem [resolvable:$true] %s39
      %42 = dma.hbm_to_vmem [thread:$0]  %s4, 16, %s40, [#allocation6]
    $region21: #{mlp_categorical_actor_forward.1} parent=1 // pred_fallthru
      _
    // Predicated region
    $region22: #{mlp_categorical_actor_forward.1} parent=1 // pred_check
      _
    $region23: #{mlp_categorical_actor_forward.1} parent=1 // pred_check_branch
      %44 = sbr.rel (0) target = $region25
    $region24: #{mlp_categorical_actor_forward.1} parent=1 // pred_region
      _
    $region25: #{mlp_categorical_actor_forward.1} parent=1 // pred_fallthru
      _
    // Predicated region
    $region26: #{mlp_categorical_actor_forward.1} parent=1 // pred_check
      _
    $region27: #{mlp_categorical_actor_forward.1} parent=1 // pred_check_branch
      %46 = sbr.rel (0) target = $region29
    $region28: #{mlp_categorical_actor_forward.1} parent=1 // pred_region
      _
    $region29: #{mlp_categorical_actor_forward.1} parent=1 // pred_fallthru
      _
    // Predicated region
    $region30: #{mlp_categorical_actor_forward.1} parent=1 // pred_check
      _
    $region31: #{mlp_categorical_actor_forward.1} parent=1 // pred_check_branch
      %48 = sbr.rel (0) target = $region33
    $region32: #{mlp_categorical_actor_forward.1} parent=1 // pred_region
      %49 = dma.done [#allocation3], 128
    $region33: #{mlp_categorical_actor_forward.1} parent=1 // pred_fallthru
      _
    // Predicated region
    $region34: #{mlp_categorical_actor_forward.1} parent=1 // pred_check
      _
    $region35: #{mlp_categorical_actor_forward.1} parent=1 // pred_check_branch
      %51 = sbr.rel (0) target = $region37
    $region36: #{mlp_categorical_actor_forward.1} parent=1 // pred_region
      %52 = dma.done [#allocation6], 16
    $region37: #{mlp_categorical_actor_forward.1} parent=1 // pred_fallthru
      _
    %v54 = vld [vmem:[%s0] sm:$0xff]
    %v55 = vpack.c.bf16 %v54, %v54
    %v56 = vld [vmem:[#allocation2] sm:$0xf]
    %v57 = vld [vmem:[#allocation2 + $0x4] sm:$0xf]
    %v58 = vld [vmem:[%s2] sm:$0x1]
    %v60 = vlaneseq
    %v61 = vshrl.u32 %v60, 7
    %v62 = vsub.s32 0, %v61
    %v63 = vrot.slane %v58, %v62
    %v67 = vunpack.c.l.b16 %v56
    %v68 = vunpack.c.l.b16 %v57
    %v69 = vpack.c.b16 %v68, %v67
    %vm71 = vcmask 130048
    %v73 = vsel %vm71, %v55, 0
    %75 = vmatprep.subr.bf16.mxu0 0
    %76 = vmatpush1.bf16.msra.mxu0 0
    %77 = vmatprep.subr.bf16.mxu0 0
    %78 = vmatpush1.bf16.msra.mxu0 0
    %79 = vmatprep.subr.bf16.mxu0 0
    %80 = vmatpush1.bf16.msra.mxu0 0
    %81 = vmatprep.subr.bf16.mxu0 0
    %82 = vmatpush1.bf16.msra.mxu0 0
    %83 = vmatprep.subr.bf16.mxu0 0
    %84 = vmatpush1.bf16.msra.mxu0 0
    %85 = vmatprep.subr.bf16.mxu0 0
    %86 = vmatpush1.bf16.msra.mxu0 0
    %87 = vmatprep.subr.bf16.mxu0 0
    %88 = vmatpush1.bf16.msra.mxu0 0
    %89 = vmatprep.subr.bf16.mxu0 0
    %90 = vmatpush1.bf16.msra.mxu0 %v69
    %91 = vmatprep.subr.bf16.mxu0 0
    %92 = vmatpush2.bf16.msra.mxu0 0
    %93 = vmatprep.subr.bf16.mxu0 0
    %94 = vmatpush2.bf16.msra.mxu0 0
    %95 = vmatprep.subr.bf16.mxu0 0
    %96 = vmatpush2.bf16.msra.mxu0 0
    %97 = vmatprep.subr.bf16.mxu0 0
    %98 = vmatpush2.bf16.msra.mxu0 0
    %99 = vmatprep.subr.bf16.mxu0 0
    %100 = vmatpush2.bf16.msra.mxu0 0
    %101 = vmatprep.subr.bf16.mxu0 0
    %102 = vmatpush2.bf16.msra.mxu0 0
    %103 = vmatprep.subr.bf16.mxu0 0
    %104 = vmatpush2.bf16.msra.mxu0 0
    %105 = vmatprep.subr.bf16.mxu0 0
    %106 = vmatpush2.bf16.msra.mxu0 0
    %107 = vmatprep.mubr.bf16.mxu0 0
    %108 = vmatmul.mubr.bf16.gmra.mxu0 %v73
    %v109 = vpop.f32.mrf.mxu0
    %v110 = vadd.f32 %v63, %v109
    %v111 = vpop.f32.mrf.mxu0
    %v112 = vpop.f32.mrf.mxu0
    %v113 = vpop.f32.mrf.mxu0
    %114 = vdwg.mxu0
    %v115 = vtanh.pop %v110
    %v116 = vpack.c.bf16 %v115, %v115
    %v117 = vld [vmem:[%s3] sm:$0xf]
    %v118 = vld [vmem:[%s3 + $0x4] sm:$0xf]
    %v119 = vld [vmem:[%s3 + $0x8] sm:$0xf]
    %v120 = vld [vmem:[%s3 + $0xc] sm:$0xf]
    %v121 = vld [vmem:[#allocation5] sm:$0x1]
    %v123 = vlaneseq
    %v124 = vshrl.u32 %v123, 7
    %v125 = vsub.s32 0, %v124
    %v126 = vrot.slane %v121, %v125
    %v132 = vunpack.c.l.b16 %v117
    %v133 = vunpack.c.l.b16 %v118
    %v134 = vunpack.c.l.b16 %v119
    %v135 = vunpack.c.l.b16 %v120
    %v136 = vpack.c.b16 %v133, %v132
    %v137 = vpack.c.b16 %v135, %v134
    %vm140 = vcmask 261120
    %v142 = vsel %vm140, %v116, 0
    %144 = vmatprep.subr.bf16.mxu0 0
    %145 = vmatpush1.bf16.msra.mxu0 0
    %146 = vmatprep.subr.bf16.mxu0 0
    %147 = vmatpush1.bf16.msra.mxu0 0
    %148 = vmatprep.subr.bf16.mxu0 0
    %149 = vmatpush1.bf16.msra.mxu0 0
    %150 = vmatprep.subr.bf16.mxu0 0
    %151 = vmatpush1.bf16.msra.mxu0 0
    %152 = vmatprep.subr.bf16.mxu0 0
    %153 = vmatpush1.bf16.msra.mxu0 0
    %154 = vmatprep.subr.bf16.mxu0 0
    %155 = vmatpush1.bf16.msra.mxu0 0
    %156 = vmatprep.subr.bf16.mxu0 0
    %157 = vmatpush1.bf16.msra.mxu0 %v137
    %158 = vmatprep.subr.bf16.mxu0 0
    %159 = vmatpush1.bf16.msra.mxu0 %v136
    %160 = vmatprep.subr.bf16.mxu0 0
    %161 = vmatpush2.bf16.msra.mxu0 0
    %162 = vmatprep.subr.bf16.mxu0 0
    %163 = vmatpush2.bf16.msra.mxu0 0
    %164 = vmatprep.subr.bf16.mxu0 0
    %165 = vmatpush2.bf16.msra.mxu0 0
    %166 = vmatprep.subr.bf16.mxu0 0
    %167 = vmatpush2.bf16.msra.mxu0 0
    %168 = vmatprep.subr.bf16.mxu0 0
    %169 = vmatpush2.bf16.msra.mxu0 0
    %170 = vmatprep.subr.bf16.mxu0 0
    %171 = vmatpush2.bf16.msra.mxu0 0
    %172 = vmatprep.subr.bf16.mxu0 0
    %173 = vmatpush2.bf16.msra.mxu0 0
    %174 = vmatprep.subr.bf16.mxu0 0
    %175 = vmatpush2.bf16.msra.mxu0 0
    %176 = vmatprep.mubr.bf16.mxu0 0
    %177 = vmatmul.mubr.bf16.gmra.mxu0 %v142
    %v178 = vpop.f32.mrf.mxu0
    %v179 = vadd.f32 %v126, %v178
    %v180 = vpop.f32.mrf.mxu0
    %v181 = vpop.f32.mrf.mxu0
    %v182 = vpop.f32.mrf.mxu0
    %183 = vdwg.mxu0
    %v184 = vtanh.pop %v179
    %v185 = vpack.c.bf16 %v184, %v184
    %v186 = vld [vmem:[%s5] sm:$0xf]
    %v187 = vld [vmem:[%s5 + $0x4] sm:$0xf]
    %v188 = vld [vmem:[%s5 + $0x8] sm:$0xf]
    %v189 = vld [vmem:[%s5 + $0xc] sm:$0xf]
    %v190 = vld [vmem:[%s6] sm:$0x1]
    %v192 = vlaneseq
    %v193 = vshrl.u32 %v192, 7
    %v194 = vsub.s32 0, %v193
    %v195 = vrot.slane %v190, %v194
    %v201 = vunpack.c.l.b16 %v186
    %v202 = vunpack.c.l.b16 %v187
    %v203 = vunpack.c.l.b16 %v188
    %v204 = vunpack.c.l.b16 %v189
    %v205 = vpack.c.b16 %v202, %v201
    %v206 = vpack.c.b16 %v204, %v203
    %v210 = vsel %vm140, %v185, 0
    %212 = vmatprep.subr.bf16.mxu0 0
    %213 = vmatpush1.bf16.msra.mxu0 0
    %214 = vmatprep.subr.bf16.mxu0 0
    %215 = vmatpush1.bf16.msra.mxu0 0
    %216 = vmatprep.subr.bf16.mxu0 0
    %217 = vmatpush1.bf16.msra.mxu0 0
    %218 = vmatprep.subr.bf16.mxu0 0
    %219 = vmatpush1.bf16.msra.mxu0 0
    %220 = vmatprep.subr.bf16.mxu0 0
    %221 = vmatpush1.bf16.msra.mxu0 0
    %222 = vmatprep.subr.bf16.mxu0 0
    %223 = vmatpush1.bf16.msra.mxu0 0
    %224 = vmatprep.subr.bf16.mxu0 0
    %225 = vmatpush1.bf16.msra.mxu0 %v206
    %226 = vmatprep.subr.bf16.mxu0 0
    %227 = vmatpush1.bf16.msra.mxu0 %v205
    %228 = vmatprep.subr.bf16.mxu0 0
    %229 = vmatpush2.bf16.msra.mxu0 0
    %230 = vmatprep.subr.bf16.mxu0 0
    %231 = vmatpush2.bf16.msra.mxu0 0
    %232 = vmatprep.subr.bf16.mxu0 0
    %233 = vmatpush2.bf16.msra.mxu0 0
    %234 = vmatprep.subr.bf16.mxu0 0
    %235 = vmatpush2.bf16.msra.mxu0 0
    %236 = vmatprep.subr.bf16.mxu0 0
    %237 = vmatpush2.bf16.msra.mxu0 0
    %238 = vmatprep.subr.bf16.mxu0 0
    %239 = vmatpush2.bf16.msra.mxu0 0
    %240 = vmatprep.subr.bf16.mxu0 0
    %241 = vmatpush2.bf16.msra.mxu0 0
    %242 = vmatprep.subr.bf16.mxu0 0
    %243 = vmatpush2.bf16.msra.mxu0 0
    %244 = vmatprep.mubr.bf16.mxu0 0
    %245 = vmatmul.mubr.bf16.gmra.mxu0 %v210
    %v246 = vpop.f32.mrf.mxu0
    %v247 = vadd.f32 %v195, %v246
    %v248 = vpop.f32.mrf.mxu0
    %v249 = vpop.f32.mrf.mxu0
    %v250 = vpop.f32.mrf.mxu0
    %251 = vdwg.mxu0
    %vm252 = vcmask 64512
    %253 = vst.msk [vmem:[#allocation7] sm:$0xff] %vm252, %v247
    // Predicated region
    $region38: #{mlp_categorical_actor_forward.1} parent=1 // pred_check
      _
    $region39: #{mlp_categorical_actor_forward.1} parent=1 // pred_check_branch
      %255 = sbr.rel (0) target = $region41
    $region40: #{mlp_categorical_actor_forward.1} parent=1 // pred_region
      %s257 = ssub.s32 128, 128
      %258 = vsyncadd [#allocation4], %s257
      %s260 = sshll.u32 [#allocation7], 4
      %s261 = int_to_ptr.vmem [resolvable:$true] %s260
      %263 = dma.vmem_to_hbm [thread:$0]  %s261, 128, %s7, [#allocation4]
    $region41: #{mlp_categorical_actor_forward.1} parent=1 // pred_fallthru
      _
    // Predicated region
    $region42: #{mlp_categorical_actor_forward.1} parent=1 // pred_check
      _
    $region43: #{mlp_categorical_actor_forward.1} parent=1 // pred_check_branch
      %265 = sbr.rel (0) target = $region45
    $region44: #{mlp_categorical_actor_forward.1} parent=1 // pred_region
      %266 = dma.done [#allocation4], 128
    $region45: #{mlp_categorical_actor_forward.1} parent=1 // pred_fallthru
      _
    %267 = vsyncpa [#allocation3], 1
    %268 = vsyncpa [#allocation6], 1
    %269 = vsyncpa [#allocation4], 1

</llo_original>
